<compile_context>
chip_gen: v7x
topology: tpu7x:2x2x1
jax: 0.10.0
libtpu: 0.0.40
codegen_flags: <defaults>
</compile_context>

<pallas_src>
import jax
import jax.numpy as jnp
from jax.experimental import pallas as pl
from jax.experimental.pallas import tpu as pltpu

LANE = 128
SUBLANE_BF16 = 16  # minimum sublane tile for 16-bit packed dtypes


def _round_up(x: int, m: int) -> int:
    return ((x + m - 1) // m) * m


def _mlp_kernel(x_ref, w1_ref, b1_ref, w2_ref, b2_ref, w3_ref, b3_ref, o_ref):
    # x / weights: bf16 (lane-dense, padded); biases: f32.
    x = x_ref[...]
    # Biases read once per invocation (hoisted; no per-step re-broadcast).
    b1 = b1_ref[...]
    b2 = b2_ref[...]
    b3 = b3_ref[...]

    # Layer 1: Linear + ReLU  (bf16 MXU matmul, f32 accumulate / bias / ReLU)
    h1 = jnp.dot(x, w1_ref[...], preferred_element_type=jnp.float32) + b1
    h1 = jnp.maximum(h1, 0.0).astype(w2_ref.dtype)

    # Layer 2: Linear + ReLU
    h2 = jnp.dot(h1, w2_ref[...], preferred_element_type=jnp.float32) + b2
    h2 = jnp.maximum(h2, 0.0).astype(w3_ref.dtype)

    # Layer 3: Linear (logits), no activation
    out = jnp.dot(h2, w3_ref[...], preferred_element_type=jnp.float32) + b3
    o_ref[...] = out.astype(o_ref.dtype)


def prepare_params(params, *, matmul_dtype=jnp.bfloat16):
    """Pad lane dims to multiples of 128 and cast weights to the MXU dtype ONCE.

    params: w1 [F,H], b1 [1,H], w2 [H,H], b2 [1,H], w3 [H,V], b3 [1,V] (f32,
    weights stored [in, out], i.e. transposed vs. PyTorch's [out, in]).
    """
    w1, b1 = params["w1"], params["b1"]
    w2, b2 = params["w2"], params["b2"]
    w3, b3 = params["w3"], params["b3"]
    F, H = w1.shape
    V = w3.shape[1]
    Fp, Hp, Vp = _round_up(F, LANE), _round_up(H, LANE), _round_up(V, LANE)
    return {
        "w1": jnp.pad(w1, ((0, Fp - F), (0, Hp - H))).astype(matmul_dtype),
        "w2": jnp.pad(w2, ((0, Hp - H), (0, Hp - H))).astype(matmul_dtype),
        "w3": jnp.pad(w3, ((0, Hp - H), (0, Vp - V))).astype(matmul_dtype),
        "b1": jnp.pad(b1, ((0, 0), (0, Hp - H))).astype(jnp.float32),
        "b2": jnp.pad(b2, ((0, 0), (0, Hp - H))).astype(jnp.float32),
        "b3": jnp.pad(b3, ((0, 0), (0, Vp - V))).astype(jnp.float32),
        "dims": (F, H, V, Fp, Hp, Vp),
        "matmul_dtype": matmul_dtype,
    }


def sat_solver_forward(features, prepped, *, tm=512, out_dtype=jnp.float32):
    """features: [batch, feature_dim] f32.  prepped: output of prepare_params."""
    F, H, V, Fp, Hp, Vp = prepped["dims"]
    matmul_dtype = prepped["matmul_dtype"]
    B, Fin = features.shape
    assert Fin == F, (Fin, F)

    # ---- batch tile selection: round to bf16 sublane pack, cap padding waste ----
    TM = min(tm, _round_up(B, SUBLANE_BF16))
    while TM > SUBLANE_BF16:
        Bp = _round_up(B, TM)
        if (Bp - B) / Bp <= 0.10:
            break
        TM = max(SUBLANE_BF16, _round_up(TM // 2, SUBLANE_BF16))
    Bp = _round_up(B, TM)
    # TODO(synk): on v7x (2 TCs) halve TM or split Vp across a second parallel
    # axis when Bp // TM == 1 so both TensorCores get work.

    # Only the (input-dependent) activations are padded/cast per call.
    xp = jnp.pad(features, ((0, Bp - B), (0, Fp - F))).astype(matmul_dtype)

    # ---- VMEM budget from the actual chip generation ----
    try:
        vmem_cap = int(pltpu.get_tpu_info().vmem_capacity_bytes)
    except Exception:  # info query unavailable -> conservative v7x-safe default
        vmem_cap = 64 << 20
    vmem_cap = int(0.85 * vmem_cap)

    esz = jnp.dtype(matmul_dtype).itemsize
    out_esz = jnp.dtype(out_dtype).itemsize

    def build(weight_buffers):
        # Resident weights * their buffer count + biases + pipelined IO tiles
        # + live f32 intermediates, with fixed headroom, capped per-chip.
        bytes_weights = weight_buffers * (Fp * Hp + Hp * Hp + Hp * Vp) * esz
        bytes_bias = weight_buffers * (2 * Hp + Vp) * 4
        bytes_io = 2 * (TM * Fp * esz) + 2 * (TM * Vp * out_esz)
        bytes_act = 3 * TM * Hp * 4
        vmem_limit = int(min(
            max(bytes_weights + bytes_bias + bytes_io + bytes_act + (8 << 20),
                32 << 20),
            vmem_cap))

        const = lambda i: (0, 0)
        wkw = dict(pipeline_mode=pl.Buffered(1)) if weight_buffers == 1 else {}
        in_specs = [
            pl.BlockSpec((TM, Fp), lambda i: (i, 0)),    # activations: batch-tiled
            pl.BlockSpec((Fp, Hp), const, **wkw),        # w1: resident, single-buffered
            pl.BlockSpec((1, Hp), const, **wkw),         # b1
            pl.BlockSpec((Hp, Hp), const, **wkw),        # w2
            pl.BlockSpec((1, Hp), const, **wkw),         # b2
            pl.BlockSpec((Hp, Vp), const, **wkw),        # w3
            pl.BlockSpec((1, Vp), const, **wkw),         # b3
        ]
        return pl.pallas_call(
            _mlp_kernel,
            out_shape=jax.ShapeDtypeStruct((Bp, Vp), out_dtype),
            grid_spec=pltpu.PrefetchScalarGridSpec(
                num_scalar_prefetch=0,
                grid=(Bp // TM,),
                in_specs=in_specs,
                out_specs=pl.BlockSpec((TM, Vp), lambda i: (i, 0)),
            ),
            compiler_params=pltpu.CompilerParams(
                dimension_semantics=("parallel",),
                vmem_limit_bytes=vmem_limit,
            ),
        )

    args = (xp, prepped["w1"], prepped["b1"], prepped["w2"], prepped["b2"],
            prepped["w3"], prepped["b3"])
    try:
        out_padded = build(1)(*args)       # single-buffered resident weights
    except Exception:
        out_padded = build(2)(*args)       # fallback: default double-buffering

    # TODO(synk): for hidden_dim >~ 4k on v7x, add a trailing "arbitrary" K grid
    # axis tiling w2's contraction dim with an f32 VMEM accumulator + pl.when
    # init/finalize, instead of keeping w2 whole in VMEM.
    return out_padded[:B, :V]


def init_params(key, feature_dim, num_vars, hidden_dim):
    """Deterministic synthetic init (Kaiming-uniform-ish like nn.Linear defaults)."""
    ks = jax.random.split(key, 6)

    def linear(kw, kb, fan_in, fan_out):
        bound = 1.0 / jnp.sqrt(fan_in)
        # stored as [in, out] (transposed vs. PyTorch's [out, in])
        w = jax.random.uniform(kw, (fan_in, fan_out), jnp.float32, -bound, bound)
        b = jax.random.uniform(kb, (1, fan_out), jnp.float32, -bound, bound)
        return w, b

    w1, b1 = linear(ks[0], ks[1], feature_dim, hidden_dim)
    w2, b2 = linear(ks[2], ks[3], hidden_dim, hidden_dim)
    w3, b3 = linear(ks[4], ks[5], hidden_dim, num_vars)
    return {"w1": w1, "b1": b1, "w2": w2, "b2": b2, "w3": w3, "b3": b3}


def reference_forward_f32(features, params):
    h1 = jnp.maximum(features @ params["w1"] + params["b1"], 0.0)
    h2 = jnp.maximum(h1 @ params["w2"] + params["b2"], 0.0)
    return h2 @ params["w3"] + params["b3"]


def reference_forward_matched(features, params, dtype=jnp.bfloat16):
    """Same numerics as the kernel: bf16 operands, f32 accumulation/bias/ReLU."""
    f32 = jnp.float32
    x = features.astype(dtype)
    h1 = jnp.dot(x, params["w1"].astype(dtype), preferred_element_type=f32) + params["b1"]
    h1 = jnp.maximum(h1, 0.0).astype(dtype)
    h2 = jnp.dot(h1, params["w2"].astype(dtype), preferred_element_type=f32) + params["b2"]
    h2 = jnp.maximum(h2, 0.0).astype(dtype)
    return jnp.dot(h2, params["w3"].astype(dtype), preferred_element_type=f32) + params["b3"]


if __name__ == "__main__":
    # Small shapes consistent with the module's forward:
    #   features: [batch, feature_dim] -> logits: [batch, num_vars]
    batch, feature_dim, hidden_dim, num_vars = 2, 16, 32, 8

    key = jax.random.PRNGKey(0)
    k_feat, k_param = jax.random.split(key)

    features = jax.random.normal(k_feat, (batch, feature_dim), jnp.float32)
    params = init_params(k_param, feature_dim, num_vars, hidden_dim)

    # Weight padding + bf16 cast done once (hoisted out of the per-call path).
    prepped = prepare_params(params)

    logits = sat_solver_forward(features, prepped)
    jax.block_until_ready(logits)

    assert logits.shape == (batch, num_vars)

    # Check against a reference with identical (bf16-operand, f32-accum) numerics.
    ref_matched = reference_forward_matched(features, params)
    assert jnp.allclose(logits, ref_matched, atol=1e-2, rtol=1e-2), (
        float(jnp.max(jnp.abs(logits - ref_matched))))

    # Sanity check against the pure-f32 PyTorch-equivalent reference
    # (looser tolerance accounts for bf16 operand rounding).
    ref_f32 = reference_forward_f32(features, params)
    assert float(jnp.max(jnp.abs(logits - ref_f32))) < 5e-2

    print("KERNEL_OK")
</pallas_src>

<mosaic_0001>
module attributes {stable_mosaic.version = 11 : i64} {
  func.func @_mlp_kernel(%arg0: i32, %arg1: memref<16x128xbf16, #tpu.memory_space<vmem>>, %arg2: memref<128x128xbf16, #tpu.memory_space<vmem>>, %arg3: memref<1x128xf32, #tpu.memory_space<vmem>>, %arg4: memref<128x128xbf16, #tpu.memory_space<vmem>>, %arg5: memref<1x128xf32, #tpu.memory_space<vmem>>, %arg6: memref<128x128xbf16, #tpu.memory_space<vmem>>, %arg7: memref<1x128xf32, #tpu.memory_space<vmem>>, %arg8: memref<16x128xf32, #tpu.memory_space<vmem>>) attributes {dimension_semantics = [#tpu.dimension_semantics<parallel>], iteration_bounds = array<i64: 1>, scalar_prefetch = 0 : i64, scratch_operands = 0 : i64, tpu.core_type = #tpu.core_type<tc>, window_params = [{transform_indices = @transform_0, window_bounds = array<i64: 16, 128>}, {pipeline_mode = #tpu.pipeline_mode<synchronous>, transform_indices = @transform_1, window_bounds = array<i64: 128, 128>}, {pipeline_mode = #tpu.pipeline_mode<synchronous>, transform_indices = @transform_2, window_bounds = array<i64: 1, 128>}, {pipeline_mode = #tpu.pipeline_mode<synchronous>, transform_indices = @transform_3, window_bounds = array<i64: 128, 128>}, {pipeline_mode = #tpu.pipeline_mode<synchronous>, transform_indices = @transform_4, window_bounds = array<i64: 1, 128>}, {pipeline_mode = #tpu.pipeline_mode<synchronous>, transform_indices = @transform_5, window_bounds = array<i64: 128, 128>}, {pipeline_mode = #tpu.pipeline_mode<synchronous>, transform_indices = @transform_6, window_bounds = array<i64: 1, 128>}, {transform_indices = @transform_7, window_bounds = array<i64: 16, 128>}]} {
    %c0 = arith.constant 0 : index
    %c0_0 = arith.constant 0 : index
    %0 = vector.load %arg1[%c0, %c0_0] : memref<16x128xbf16, #tpu.memory_space<vmem>>, vector<16x128xbf16>
    %c0_1 = arith.constant 0 : index
    %c0_2 = arith.constant 0 : index
    %1 = vector.load %arg3[%c0_1, %c0_2] : memref<1x128xf32, #tpu.memory_space<vmem>>, vector<1x128xf32>
    %c0_3 = arith.constant 0 : index
    %c0_4 = arith.constant 0 : index
    %2 = vector.load %arg5[%c0_3, %c0_4] : memref<1x128xf32, #tpu.memory_space<vmem>>, vector<1x128xf32>
    %c0_5 = arith.constant 0 : index
    %c0_6 = arith.constant 0 : index
    %3 = vector.load %arg7[%c0_5, %c0_6] : memref<1x128xf32, #tpu.memory_space<vmem>>, vector<1x128xf32>
    %c0_7 = arith.constant 0 : index
    %c0_8 = arith.constant 0 : index
    %4 = vector.load %arg2[%c0_7, %c0_8] : memref<128x128xbf16, #tpu.memory_space<vmem>>, vector<128x128xbf16>
    %cst = arith.constant dense<0.000000e+00> : vector<16x128xf32>
    %5 = tpu.matmul %0, %4, %cst {dimension_numbers = #tpu.dot_dimension_numbers<[1], [0], [0], [1], [0, 0, 1, 1], [], []>} : vector<16x128xbf16>, vector<128x128xbf16>, vector<16x128xf32> -> vector<16x128xf32>
    %6 = vector.broadcast %1 : vector<1x128xf32> to vector<16x128xf32>
    %7 = arith.addf %5, %6 : vector<16x128xf32>
    %cst_9 = arith.constant 0.000000e+00 : f32
    %8 = vector.broadcast %cst_9 : f32 to vector<16x128xf32>
    %9 = arith.maximumf %7, %8 : vector<16x128xf32>
    %10 = arith.truncf %9 : vector<16x128xf32> to vector<16x128xbf16>
    %c0_10 = arith.constant 0 : index
    %c0_11 = arith.constant 0 : index
    %11 = vector.load %arg4[%c0_10, %c0_11] : memref<128x128xbf16, #tpu.memory_space<vmem>>, vector<128x128xbf16>
    %cst_12 = arith.constant dense<0.000000e+00> : vector<16x128xf32>
    %12 = tpu.matmul %10, %11, %cst_12 {dimension_numbers = #tpu.dot_dimension_numbers<[1], [0], [0], [1], [0, 0, 1, 1], [], []>} : vector<16x128xbf16>, vector<128x128xbf16>, vector<16x128xf32> -> vector<16x128xf32>
    %13 = vector.broadcast %2 : vector<1x128xf32> to vector<16x128xf32>
    %14 = arith.addf %12, %13 : vector<16x128xf32>
    %cst_13 = arith.constant 0.000000e+00 : f32
    %15 = vector.broadcast %cst_13 : f32 to vector<16x128xf32>
    %16 = arith.maximumf %14, %15 : vector<16x128xf32>
    %17 = arith.truncf %16 : vector<16x128xf32> to vector<16x128xbf16>
    %c0_14 = arith.constant 0 : index
    %c0_15 = arith.constant 0 : index
    %18 = vector.load %arg6[%c0_14, %c0_15] : memref<128x128xbf16, #tpu.memory_space<vmem>>, vector<128x128xbf16>
    %cst_16 = arith.constant dense<0.000000e+00> : vector<16x128xf32>
    %19 = tpu.matmul %17, %18, %cst_16 {dimension_numbers = #tpu.dot_dimension_numbers<[1], [0], [0], [1], [0, 0, 1, 1], [], []>} : vector<16x128xbf16>, vector<128x128xbf16>, vector<16x128xf32> -> vector<16x128xf32>
    %20 = vector.broadcast %3 : vector<1x128xf32> to vector<16x128xf32>
    %21 = arith.addf %19, %20 : vector<16x128xf32>
    %c0_17 = arith.constant 0 : index
    %c0_18 = arith.constant 0 : index
    %22 = vector.load %arg8[%c0_17, %c0_18] : memref<16x128xf32, #tpu.memory_space<vmem>>, vector<16x128xf32>
    tpu.vector_store %arg8[%c0_17, %c0_18], %21 {strides = array<i32>} : memref<16x128xf32, #tpu.memory_space<vmem>>, vector<16x128xf32>,
    return
  }
  func.func @transform_0(%arg0: i32) -> (i32, i32) {
    %c0_i32 = arith.constant 0 : i32
    %c0_i32_0 = arith.constant 0 : i32
    return %arg0, %c0_i32 : i32, i32
  }
  func.func @transform_1(%arg0: i32) -> (i32, i32) {
    %c0_i32 = arith.constant 0 : i32
    %c0_i32_0 = arith.constant 0 : i32
    %c0_i32_1 = arith.constant 0 : i32
    return %c0_i32, %c0_i32_0 : i32, i32
  }
  func.func @transform_2(%arg0: i32) -> (i32, i32) {
    %c0_i32 = arith.constant 0 : i32
    %c0_i32_0 = arith.constant 0 : i32
    %c0_i32_1 = arith.constant 0 : i32
    return %c0_i32, %c0_i32_0 : i32, i32
  }
  func.func @transform_3(%arg0: i32) -> (i32, i32) {
    %c0_i32 = arith.constant 0 : i32
    %c0_i32_0 = arith.constant 0 : i32
    %c0_i32_1 = arith.constant 0 : i32
    return %c0_i32, %c0_i32_0 : i32, i32
  }
  func.func @transform_4(%arg0: i32) -> (i32, i32) {
    %c0_i32 = arith.constant 0 : i32
    %c0_i32_0 = arith.constant 0 : i32
    %c0_i32_1 = arith.constant 0 : i32
    return %c0_i32, %c0_i32_0 : i32, i32
  }
  func.func @transform_5(%arg0: i32) -> (i32, i32) {
    %c0_i32 = arith.constant 0 : i32
    %c0_i32_0 = arith.constant 0 : i32
    %c0_i32_1 = arith.constant 0 : i32
    return %c0_i32, %c0_i32_0 : i32, i32
  }
  func.func @transform_6(%arg0: i32) -> (i32, i32) {
    %c0_i32 = arith.constant 0 : i32
    %c0_i32_0 = arith.constant 0 : i32
    %c0_i32_1 = arith.constant 0 : i32
    return %c0_i32, %c0_i32_0 : i32, i32
  }
  func.func @transform_7(%arg0: i32) -> (i32, i32) {
    %c0_i32 = arith.constant 0 : i32
    %c0_i32_0 = arith.constant 0 : i32
    return %arg0, %c0_i32 : i32, i32
  }
}

module attributes {stable_mosaic.version = 11 : i64} {
  func.func @_mlp_kernel(%arg0: i32, %arg1: memref<16x128xbf16, #tpu.memory_space<vmem>>, %arg2: memref<128x128xbf16, #tpu.memory_space<vmem>>, %arg3: memref<1x128xf32, #tpu.memory_space<vmem>>, %arg4: memref<128x128xbf16, #tpu.memory_space<vmem>>, %arg5: memref<1x128xf32, #tpu.memory_space<vmem>>, %arg6: memref<128x128xbf16, #tpu.memory_space<vmem>>, %arg7: memref<1x128xf32, #tpu.memory_space<vmem>>, %arg8: memref<16x128xf32, #tpu.memory_space<vmem>>) attributes {dimension_semantics = [#tpu.dimension_semantics<parallel>], iteration_bounds = array<i64: 1>, scalar_prefetch = 0 : i64, scratch_operands = 0 : i64, tpu.core_type = #tpu.core_type<tc>, window_params = [{transform_indices = @transform_0, window_bounds = array<i64: 16, 128>}, {pipeline_mode = #tpu.pipeline_mode<synchronous>, transform_indices = @transform_1, window_bounds = array<i64: 128, 128>}, {pipeline_mode = #tpu.pipeline_mode<synchronous>, transform_indices = @transform_2, window_bounds = array<i64: 1, 128>}, {pipeline_mode = #tpu.pipeline_mode<synchronous>, transform_indices = @transform_3, window_bounds = array<i64: 128, 128>}, {pipeline_mode = #tpu.pipeline_mode<synchronous>, transform_indices = @transform_4, window_bounds = array<i64: 1, 128>}, {pipeline_mode = #tpu.pipeline_mode<synchronous>, transform_indices = @transform_5, window_bounds = array<i64: 128, 128>}, {pipeline_mode = #tpu.pipeline_mode<synchronous>, transform_indices = @transform_6, window_bounds = array<i64: 1, 128>}, {transform_indices = @transform_7, window_bounds = array<i64: 16, 128>}]} {
    %c0 = arith.constant 0 : index
    %c0_0 = arith.constant 0 : index
    %0 = vector.load %arg1[%c0, %c0_0] : memref<16x128xbf16, #tpu.memory_space<vmem>>, vector<16x128xbf16>
    %c0_1 = arith.constant 0 : index
    %c0_2 = arith.constant 0 : index
    %1 = vector.load %arg3[%c0_1, %c0_2] : memref<1x128xf32, #tpu.memory_space<vmem>>, vector<1x128xf32>
    %c0_3 = arith.constant 0 : index
    %c0_4 = arith.constant 0 : index
    %2 = vector.load %arg5[%c0_3, %c0_4] : memref<1x128xf32, #tpu.memory_space<vmem>>, vector<1x128xf32>
    %c0_5 = arith.constant 0 : index
    %c0_6 = arith.constant 0 : index
    %3 = vector.load %arg7[%c0_5, %c0_6] : memref<1x128xf32, #tpu.memory_space<vmem>>, vector<1x128xf32>
    %c0_7 = arith.constant 0 : index
    %c0_8 = arith.constant 0 : index
    %4 = vector.load %arg2[%c0_7, %c0_8] : memref<128x128xbf16, #tpu.memory_space<vmem>>, vector<128x128xbf16>
    %cst = arith.constant dense<0.000000e+00> : vector<16x128xf32>
    %5 = tpu.matmul %0, %4, %cst {dimension_numbers = #tpu.dot_dimension_numbers<[1], [0], [0], [1], [0, 0, 1, 1], [], []>} : vector<16x128xbf16>, vector<128x128xbf16>, vector<16x128xf32> -> vector<16x128xf32>
    %6 = vector.broadcast %1 : vector<1x128xf32> to vector<16x128xf32>
    %7 = arith.addf %5, %6 : vector<16x128xf32>
    %cst_9 = arith.constant 0.000000e+00 : f32
    %8 = vector.broadcast %cst_9 : f32 to vector<16x128xf32>
    %9 = arith.maximumf %7, %8 : vector<16x128xf32>
    %10 = arith.truncf %9 : vector<16x128xf32> to vector<16x128xbf16>
    %c0_10 = arith.constant 0 : index
    %c0_11 = arith.constant 0 : index
    %11 = vector.load %arg4[%c0_10, %c0_11] : memref<128x128xbf16, #tpu.memory_space<vmem>>, vector<128x128xbf16>
    %cst_12 = arith.constant dense<0.000000e+00> : vector<16x128xf32>
    %12 = tpu.matmul %10, %11, %cst_12 {dimension_numbers = #tpu.dot_dimension_numbers<[1], [0], [0], [1], [0, 0, 1, 1], [], []>} : vector<16x128xbf16>, vector<128x128xbf16>, vector<16x128xf32> -> vector<16x128xf32>
    %13 = vector.broadcast %2 : vector<1x128xf32> to vector<16x128xf32>
    %14 = arith.addf %12, %13 : vector<16x128xf32>
    %cst_13 = arith.constant 0.000000e+00 : f32
    %15 = vector.broadcast %cst_13 : f32 to vector<16x128xf32>
    %16 = arith.maximumf %14, %15 : vector<16x128xf32>
    %17 = arith.truncf %16 : vector<16x128xf32> to vector<16x128xbf16>
    %c0_14 = arith.constant 0 : index
    %c0_15 = arith.constant 0 : index
    %18 = vector.load %arg6[%c0_14, %c0_15] : memref<128x128xbf16, #tpu.memory_space<vmem>>, vector<128x128xbf16>
    %cst_16 = arith.constant dense<0.000000e+00> : vector<16x128xf32>
    %19 = tpu.matmul %17, %18, %cst_16 {dimension_numbers = #tpu.dot_dimension_numbers<[1], [0], [0], [1], [0, 0, 1, 1], [], []>} : vector<16x128xbf16>, vector<128x128xbf16>, vector<16x128xf32> -> vector<16x128xf32>
    %20 = vector.broadcast %3 : vector<1x128xf32> to vector<16x128xf32>
    %21 = arith.addf %19, %20 : vector<16x128xf32>
    %c0_17 = arith.constant 0 : index
    %c0_18 = arith.constant 0 : index
    %22 = vector.load %arg8[%c0_17, %c0_18] : memref<16x128xf32, #tpu.memory_space<vmem>>, vector<16x128xf32>
    tpu.vector_store %arg8[%c0_17, %c0_18], %21 {strides = array<i32>} : memref<16x128xf32, #tpu.memory_space<vmem>>, vector<16x128xf32>,
    return
  }
  func.func @transform_0(%arg0: i32) -> (i32, i32) {
    %c0_i32 = arith.constant 0 : i32
    %c0_i32_0 = arith.constant 0 : i32
    return %arg0, %c0_i32 : i32, i32
  }
  func.func @transform_1(%arg0: i32) -> (i32, i32) {
    %c0_i32 = arith.constant 0 : i32
    %c0_i32_0 = arith.constant 0 : i32
    %c0_i32_1 = arith.constant 0 : i32
    return %c0_i32, %c0_i32_0 : i32, i32
  }
  func.func @transform_2(%arg0: i32) -> (i32, i32) {
    %c0_i32 = arith.constant 0 : i32
    %c0_i32_0 = arith.constant 0 : i32
    %c0_i32_1 = arith.constant 0 : i32
    return %c0_i32, %c0_i32_0 : i32, i32
  }
  func.func @transform_3(%arg0: i32) -> (i32, i32) {
    %c0_i32 = arith.constant 0 : i32
    %c0_i32_0 = arith.constant 0 : i32
    %c0_i32_1 = arith.constant 0 : i32
    return %c0_i32, %c0_i32_0 : i32, i32
  }
  func.func @transform_4(%arg0: i32) -> (i32, i32) {
    %c0_i32 = arith.constant 0 : i32
    %c0_i32_0 = arith.constant 0 : i32
    %c0_i32_1 = arith.constant 0 : i32
    return %c0_i32, %c0_i32_0 : i32, i32
  }
  func.func @transform_5(%arg0: i32) -> (i32, i32) {
    %c0_i32 = arith.constant 0 : i32
    %c0_i32_0 = arith.constant 0 : i32
    %c0_i32_1 = arith.constant 0 : i32
    return %c0_i32, %c0_i32_0 : i32, i32
  }
  func.func @transform_6(%arg0: i32) -> (i32, i32) {
    %c0_i32 = arith.constant 0 : i32
    %c0_i32_0 = arith.constant 0 : i32
    %c0_i32_1 = arith.constant 0 : i32
    return %c0_i32, %c0_i32_0 : i32, i32
  }
  func.func @transform_7(%arg0: i32) -> (i32, i32) {
    %c0_i32 = arith.constant 0 : i32
    %c0_i32_0 = arith.constant 0 : i32
    return %arg0, %c0_i32 : i32, i32
  }
}

</mosaic_0001>

<llo_original>
// kernel: tpu_custom_call.1
$region0: #{tpu_custom_call.1}
  #allocation0 [shape = 'u32[]', space=smem, size = 0x4, offset = 0x4, fixed_abs, tag = 'smem constant byte address 0x4 - core index']
  #allocation1 [shape = 'u32[144,128]{1,0:T(1,128)}', space=vmem, size = 0x12000, scoped, tag = 'internal scratch']
  %s0 = inlined_call_operand.hbm [shape: bf16[16,128], index: 0, kind: input, shape index: {}]
  %s1 = inlined_call_operand.hbm [shape: bf16[128,128], index: 1, kind: input, shape index: {}]
  %s2 = inlined_call_operand.vmem [shape: f32[1,128], index: 2, kind: input, shape index: {}]
  %s3 = inlined_call_operand.hbm [shape: bf16[128,128], index: 3, kind: input, shape index: {}]
  %s4 = inlined_call_operand.vmem [shape: f32[1,128], index: 4, kind: input, shape index: {}]
  %s5 = inlined_call_operand.hbm [shape: bf16[128,128], index: 5, kind: input, shape index: {}]
  %s6 = inlined_call_operand.vmem [shape: f32[1,128], index: 6, kind: input, shape index: {}]
  %s7 = inlined_call_operand.hbm [shape: f32[16,128], index: 7, kind: output, shape index: {}]
  %s8 = sld [smem:[#allocation0]]
  $region54: #{tpu_custom_call.1} parent=0
    _
  %s10 = ssub.s32 1, %s8
  %s11 = scalar_select 0, %s10, %s8
  $region1: #{tpu_custom_call.1} parent=0
    #allocation2 [shape = 'u8[4096]{0}', space=vmem, size = 0x1000, scoped, tag = 'input window, operand 0, single buffered']
    #allocation3 [shape = 's32[1]{0}', space=sflag, size = 0x4, scoped, tag = 'scoped memory for tpu_custom_call.1']
    #allocation4 [shape = 's32[1]{0}', space=sflag, size = 0x4, scoped, tag = 'scoped memory for tpu_custom_call.1']
    #allocation5 [shape = 'u8[32768]{0}', space=vmem, size = 0x8000, scoped, tag = 'input window, operand 1, single buffered']
    #allocation6 [shape = 's32[1]{0}', space=sflag, size = 0x4, scoped, tag = 'scoped memory for tpu_custom_call.1']
    #allocation7 [shape = 'u8[32768]{0}', space=vmem, size = 0x8000, scoped, tag = 'input window, operand 3, single buffered']
    #allocation8 [shape = 'u8[32768]{0}', space=vmem, size = 0x8000, scoped, tag = 'input window, operand 5, single buffered']
    #allocation9 [shape = 's32[1]{0}', space=sflag, size = 0x4, scoped, tag = 'scoped memory for tpu_custom_call.1']
    #allocation10 [shape = 'u8[8192]{0}', space=vmem, size = 0x2000, scoped, tag = 'output window, operand 0, single buffered']
    %12 = vsyncpa [#allocation3], 0
    %13 = vsyncpa [#allocation6], 0
    %14 = vsyncpa [#allocation9], 0
    %15 = vsyncpa [#allocation4], 0
    // Predicated region
    $region2: #{tpu_custom_call.1} parent=1 // pred_check
      _
    $region3: #{tpu_custom_call.1} parent=1 // pred_check_branch
      %17 = sbr.rel (0) target = $region5
    $region4: #{tpu_custom_call.1} parent=1 // pred_region
      %s19 = ssub.s32 128, 128
      %20 = vsyncadd [#allocation3], %s19
      %s21 = sshll.u32 [#allocation2], 4
      %s22 = int_to_ptr.vmem [resolvable:$true] %s21
      %27 = dma.hbm_to_vmem [thread:$0]  %s0, 128, %s22, [#allocation3], 64, 64, 4
    $region5: #{tpu_custom_call.1} parent=1 // pred_fallthru
      _
    // Predicated region
    $region6: #{tpu_custom_call.1} parent=1 // pred_check
      _
    $region7: #{tpu_custom_call.1} parent=1 // pred_check_branch
      %29 = sbr.rel (0) target = $region9
    $region8: #{tpu_custom_call.1} parent=1 // pred_region
      %s31 = ssub.s32 1024, 1024
      %32 = vsyncadd [#allocation6], %s31
      %s33 = sshll.u32 [#allocation5], 4
      %s34 = int_to_ptr.vmem [resolvable:$true] %s33
      %39 = dma.hbm_to_vmem [thread:$0]  %s1, 1024, %s34, [#allocation6], 64, 64, 4
    $region9: #{tpu_custom_call.1} parent=1 // pred_fallthru
      _
    // Predicated region
    $region10: #{tpu_custom_call.1} parent=1 // pred_check
      _
    $region11: #{tpu_custom_call.1} parent=1 // pred_check_branch
      %41 = sbr.rel (0) target = $region13
    $region12: #{tpu_custom_call.1} parent=1 // pred_region
      _
    $region13: #{tpu_custom_call.1} parent=1 // pred_fallthru
      _
    // Predicated region
    $region14: #{tpu_custom_call.1} parent=1 // pred_check
      _
    $region15: #{tpu_custom_call.1} parent=1 // pred_check_branch
      %43 = sbr.rel (0) target = $region17
    $region16: #{tpu_custom_call.1} parent=1 // pred_region
      %s45 = ssub.s32 1024, 1024
      %46 = vsyncadd [#allocation6], %s45
      %s47 = sshll.u32 [#allocation7], 4
      %s48 = int_to_ptr.vmem [resolvable:$true] %s47
      %53 = dma.hbm_to_vmem [thread:$0]  %s3, 1024, %s48, [#allocation6], 64, 64, 4
    $region17: #{tpu_custom_call.1} parent=1 // pred_fallthru
      _
    // Predicated region
    $region18: #{tpu_custom_call.1} parent=1 // pred_check
      _
    $region19: #{tpu_custom_call.1} parent=1 // pred_check_branch
      %55 = sbr.rel (0) target = $region21
    $region20: #{tpu_custom_call.1} parent=1 // pred_region
      _
    $region21: #{tpu_custom_call.1} parent=1 // pred_fallthru
      _
    // Predicated region
    $region22: #{tpu_custom_call.1} parent=1 // pred_check
      _
    $region23: #{tpu_custom_call.1} parent=1 // pred_check_branch
      %57 = sbr.rel (0) target = $region25
    $region24: #{tpu_custom_call.1} parent=1 // pred_region
      %s59 = ssub.s32 1024, 1024
      %60 = vsyncadd [#allocation9], %s59
      %s61 = sshll.u32 [#allocation8], 4
      %s62 = int_to_ptr.vmem [resolvable:$true] %s61
      %67 = dma.hbm_to_vmem [thread:$0]  %s5, 1024, %s62, [#allocation9], 64, 64, 4
    $region25: #{tpu_custom_call.1} parent=1 // pred_fallthru
      _
    // Predicated region
    $region26: #{tpu_custom_call.1} parent=1 // pred_check
      _
    $region27: #{tpu_custom_call.1} parent=1 // pred_check_branch
      %69 = sbr.rel (0) target = $region29
    $region28: #{tpu_custom_call.1} parent=1 // pred_region
      _
    $region29: #{tpu_custom_call.1} parent=1 // pred_fallthru
      _
    // Predicated region
    $region30: #{tpu_custom_call.1} parent=1 // pred_check
      _
    $region31: #{tpu_custom_call.1} parent=1 // pred_check_branch
      %71 = sbr.rel (0) target = $region33
    $region32: #{tpu_custom_call.1} parent=1 // pred_region
      %72 = dma.done [#allocation3], 128
    $region33: #{tpu_custom_call.1} parent=1 // pred_fallthru
      _
    // Predicated region
    $region34: #{tpu_custom_call.1} parent=1 // pred_check
      _
    $region35: #{tpu_custom_call.1} parent=1 // pred_check_branch
      %74 = sbr.rel (0) target = $region37
    $region36: #{tpu_custom_call.1} parent=1 // pred_region
      %75 = dma.done [#allocation6], 1024
    $region37: #{tpu_custom_call.1} parent=1 // pred_fallthru
      _
    // Predicated region
    $region38: #{tpu_custom_call.1} parent=1 // pred_check
      _
    $region39: #{tpu_custom_call.1} parent=1 // pred_check_branch
      %77 = sbr.rel (0) target = $region41
    $region40: #{tpu_custom_call.1} parent=1 // pred_region
      %78 = dma.done [#allocation6], 1024
    $region41: #{tpu_custom_call.1} parent=1 // pred_fallthru
      _
    // Predicated region
    $region42: #{tpu_custom_call.1} parent=1 // pred_check
      _
    $region43: #{tpu_custom_call.1} parent=1 // pred_check_branch
      %80 = sbr.rel (0) target = $region45
    $region44: #{tpu_custom_call.1} parent=1 // pred_region
      %81 = dma.done [#allocation9], 1024
    $region45: #{tpu_custom_call.1} parent=1 // pred_fallthru
      _
    %v83 = vld [vmem:[#allocation2] sm:$0xf]
    %v84 = vld [vmem:[#allocation2 + $0x4] sm:$0xf]
    %v85 = vld [vmem:[%s2] sm:$0x1]
    %v86 = vld [vmem:[%s4] sm:$0x1]
    %v87 = vld [vmem:[%s6] sm:$0x1]
    %v88 = vld [vmem:[#allocation5] sm:$0xf]
    %v89 = vld [vmem:[#allocation5 + $0x4] sm:$0xf]
    %v90 = vld [vmem:[#allocation5 + $0x8] sm:$0xf]
    %v91 = vld [vmem:[#allocation5 + $0xc] sm:$0xf]
    %v92 = vld [vmem:[#allocation5 + $0x10] sm:$0xf]
    %v93 = vld [vmem:[#allocation5 + $0x14] sm:$0xf]
    %v94 = vld [vmem:[#allocation5 + $0x18] sm:$0xf]
    %v95 = vld [vmem:[#allocation5 + $0x1c] sm:$0xf]
    %v96 = vld [vmem:[#allocation5 + $0x20] sm:$0xf]
    %v97 = vld [vmem:[#allocation5 + $0x24] sm:$0xf]
    %v98 = vld [vmem:[#allocation5 + $0x28] sm:$0xf]
    %v99 = vld [vmem:[#allocation5 + $0x2c] sm:$0xf]
    %v100 = vld [vmem:[#allocation5 + $0x30] sm:$0xf]
    %v101 = vld [vmem:[#allocation5 + $0x34] sm:$0xf]
    %v102 = vld [vmem:[#allocation5 + $0x38] sm:$0xf]
    %v103 = vld [vmem:[#allocation5 + $0x3c] sm:$0xf]
    %v105 = vlaneseq
    %v106 = vshrl.u32 %v105, 7
    %v107 = vsub.s32 0, %v106
    %v108 = vrot.slane %v85, %v107
    %v112 = vunpack.c.l.b16 %v83
    %v113 = vunpack.c.l.b16 %v84
    %v114 = vpack.c.b16 %v113, %v112
    %v132 = vunpack.c.l.b16 %v88
    %v133 = vunpack.c.l.b16 %v89
    %v134 = vunpack.c.l.b16 %v90
    %v135 = vunpack.c.l.b16 %v91
    %v136 = vunpack.c.l.b16 %v92
    %v137 = vunpack.c.l.b16 %v93
    %v138 = vunpack.c.l.b16 %v94
    %v139 = vunpack.c.l.b16 %v95
    %v140 = vunpack.c.l.b16 %v96
    %v141 = vunpack.c.l.b16 %v97
    %v142 = vunpack.c.l.b16 %v98
    %v143 = vunpack.c.l.b16 %v99
    %v144 = vunpack.c.l.b16 %v100
    %v145 = vunpack.c.l.b16 %v101
    %v146 = vunpack.c.l.b16 %v102
    %v147 = vunpack.c.l.b16 %v103
    %v148 = vpack.c.b16 %v133, %v132
    %v149 = vpack.c.b16 %v135, %v134
    %v150 = vpack.c.b16 %v137, %v136
    %v151 = vpack.c.b16 %v139, %v138
    %v152 = vpack.c.b16 %v141, %v140
    %v153 = vpack.c.b16 %v143, %v142
    %v154 = vpack.c.b16 %v145, %v144
    %v155 = vpack.c.b16 %v147, %v146
    %164 = vmatprep.subr.bf16.mxu0 0
    %165 = vmatpush1.bf16.msra.mxu0 %v148
    %166 = vmatprep.subr.bf16.mxu0 0
    %167 = vmatpush1.bf16.msra.mxu0 %v149
    %168 = vmatprep.subr.bf16.mxu0 0
    %169 = vmatpush1.bf16.msra.mxu0 %v150
    %170 = vmatprep.subr.bf16.mxu0 0
    %171 = vmatpush1.bf16.msra.mxu0 %v151
    %172 = vmatprep.subr.bf16.mxu0 0
    %173 = vmatpush1.bf16.msra.mxu0 %v152
    %174 = vmatprep.subr.bf16.mxu0 0
    %175 = vmatpush1.bf16.msra.mxu0 %v153
    %176 = vmatprep.subr.bf16.mxu0 0
    %177 = vmatpush1.bf16.msra.mxu0 %v154
    %178 = vmatprep.subr.bf16.mxu0 0
    %179 = vmatpush1.bf16.msra.mxu0 %v155
    %180 = vmatprep.subr.bf16.mxu0 0
    %181 = vmatpush1.bf16.msra.mxu0 0
    %182 = vmatprep.subr.bf16.mxu0 0
    %183 = vmatpush1.bf16.msra.mxu0 0
    %184 = vmatprep.subr.bf16.mxu0 0
    %185 = vmatpush1.bf16.msra.mxu0 0
    %186 = vmatprep.subr.bf16.mxu0 0
    %187 = vmatpush1.bf16.msra.mxu0 0
    %188 = vmatprep.subr.bf16.mxu0 0
    %189 = vmatpush1.bf16.msra.mxu0 0
    %190 = vmatprep.subr.bf16.mxu0 0
    %191 = vmatpush1.bf16.msra.mxu0 0
    %192 = vmatprep.subr.bf16.mxu0 0
    %193 = vmatpush1.bf16.msra.mxu0 0
    %194 = vmatprep.subr.bf16.mxu0 0
    %195 = vmatpush1.bf16.msra.mxu0 0
    %196 = vmatprep.mubr.bf16.mxu0 0
    %197 = vmatmul.mubr.bf16.gmra.mrb[0].mxu0 %v114
    %v198 = vpop.f32.mrb[0].mxu0
    %v199 = vadd.f32 %v108, %v198
    %v200 = vpop.f32.mrb[0].mxu0
    %v201 = vpop.f32.mrb[0].mxu0
    %v202 = vadd.f32 %v108, %v201
    %v203 = vpop.f32.mrb[0].mxu0
    %204 = vdwg.mxu0
    %v205 = vmax.f32 %v199, 0.0
    %v206 = vmax.f32 %v202, 0.0
    %v207 = vpack.c.bf16 %v206, %v205
    %v208 = vld [vmem:[#allocation7] sm:$0xf]
    %v209 = vld [vmem:[#allocation7 + $0x4] sm:$0xf]
    %v210 = vld [vmem:[#allocation7 + $0x8] sm:$0xf]
    %v211 = vld [vmem:[#allocation7 + $0xc] sm:$0xf]
    %v212 = vld [vmem:[#allocation7 + $0x10] sm:$0xf]
    %v213 = vld [vmem:[#allocation7 + $0x14] sm:$0xf]
    %v214 = vld [vmem:[#allocation7 + $0x18] sm:$0xf]
    %v215 = vld [vmem:[#allocation7 + $0x1c] sm:$0xf]
    %v216 = vld [vmem:[#allocation7 + $0x20] sm:$0xf]
    %v217 = vld [vmem:[#allocation7 + $0x24] sm:$0xf]
    %v218 = vld [vmem:[#allocation7 + $0x28] sm:$0xf]
    %v219 = vld [vmem:[#allocation7 + $0x2c] sm:$0xf]
    %v220 = vld [vmem:[#allocation7 + $0x30] sm:$0xf]
    %v221 = vld [vmem:[#allocation7 + $0x34] sm:$0xf]
    %v222 = vld [vmem:[#allocation7 + $0x38] sm:$0xf]
    %v223 = vld [vmem:[#allocation7 + $0x3c] sm:$0xf]
    %v225 = vlaneseq
    %v226 = vshrl.u32 %v225, 7
    %v227 = vsub.s32 0, %v226
    %v228 = vrot.slane %v86, %v227
    %v246 = vunpack.c.l.b16 %v208
    %v247 = vunpack.c.l.b16 %v209
    %v248 = vunpack.c.l.b16 %v210
    %v249 = vunpack.c.l.b16 %v211
    %v250 = vunpack.c.l.b16 %v212
    %v251 = vunpack.c.l.b16 %v213
    %v252 = vunpack.c.l.b16 %v214
    %v253 = vunpack.c.l.b16 %v215
    %v254 = vunpack.c.l.b16 %v216
    %v255 = vunpack.c.l.b16 %v217
    %v256 = vunpack.c.l.b16 %v218
    %v257 = vunpack.c.l.b16 %v219
    %v258 = vunpack.c.l.b16 %v220
    %v259 = vunpack.c.l.b16 %v221
    %v260 = vunpack.c.l.b16 %v222
    %v261 = vunpack.c.l.b16 %v223
    %v262 = vpack.c.b16 %v247, %v246
    %v263 = vpack.c.b16 %v249, %v248
    %v264 = vpack.c.b16 %v251, %v250
    %v265 = vpack.c.b16 %v253, %v252
    %v266 = vpack.c.b16 %v255, %v254
    %v267 = vpack.c.b16 %v257, %v256
    %v268 = vpack.c.b16 %v259, %v258
    %v269 = vpack.c.b16 %v261, %v260
    %278 = vmatprep.subr.bf16.mxu0 0
    %279 = vmatpush1.bf16.msra.mxu0 %v262
    %280 = vmatprep.subr.bf16.mxu0 0
    %281 = vmatpush1.bf16.msra.mxu0 %v263
    %282 = vmatprep.subr.bf16.mxu0 0
    %283 = vmatpush1.bf16.msra.mxu0 %v264
    %284 = vmatprep.subr.bf16.mxu0 0
    %285 = vmatpush1.bf16.msra.mxu0 %v265
    %286 = vmatprep.subr.bf16.mxu0 0
    %287 = vmatpush1.bf16.msra.mxu0 %v266
    %288 = vmatprep.subr.bf16.mxu0 0
    %289 = vmatpush1.bf16.msra.mxu0 %v267
    %290 = vmatprep.subr.bf16.mxu0 0
    %291 = vmatpush1.bf16.msra.mxu0 %v268
    %292 = vmatprep.subr.bf16.mxu0 0
    %293 = vmatpush1.bf16.msra.mxu0 %v269
    %294 = vmatprep.subr.bf16.mxu0 0
    %295 = vmatpush1.bf16.msra.mxu0 0
    %296 = vmatprep.subr.bf16.mxu0 0
    %297 = vmatpush1.bf16.msra.mxu0 0
    %298 = vmatprep.subr.bf16.mxu0 0
    %299 = vmatpush1.bf16.msra.mxu0 0
    %300 = vmatprep.subr.bf16.mxu0 0
    %301 = vmatpush1.bf16.msra.mxu0 0
    %302 = vmatprep.subr.bf16.mxu0 0
    %303 = vmatpush1.bf16.msra.mxu0 0
    %304 = vmatprep.subr.bf16.mxu0 0
    %305 = vmatpush1.bf16.msra.mxu0 0
    %306 = vmatprep.subr.bf16.mxu0 0
    %307 = vmatpush1.bf16.msra.mxu0 0
    %308 = vmatprep.subr.bf16.mxu0 0
    %309 = vmatpush1.bf16.msra.mxu0 0
    %310 = vmatprep.mubr.bf16.mxu0 0
    %311 = vmatmul.mubr.bf16.gmra.mrb[0].mxu0 %v207
    %v312 = vpop.f32.mrb[0].mxu0
    %v313 = vadd.f32 %v228, %v312
    %v314 = vpop.f32.mrb[0].mxu0
    %v315 = vpop.f32.mrb[0].mxu0
    %v316 = vadd.f32 %v228, %v315
    %v317 = vpop.f32.mrb[0].mxu0
    %318 = vdwg.mxu0
    %v319 = vmax.f32 %v313, 0.0
    %v320 = vmax.f32 %v316, 0.0
    %v321 = vpack.c.bf16 %v320, %v319
    %v322 = vld [vmem:[#allocation8] sm:$0xf]
    %v323 = vld [vmem:[#allocation8 + $0x4] sm:$0xf]
    %v324 = vld [vmem:[#allocation8 + $0x8] sm:$0xf]
    %v325 = vld [vmem:[#allocation8 + $0xc] sm:$0xf]
    %v326 = vld [vmem:[#allocation8 + $0x10] sm:$0xf]
    %v327 = vld [vmem:[#allocation8 + $0x14] sm:$0xf]
    %v328 = vld [vmem:[#allocation8 + $0x18] sm:$0xf]
    %v329 = vld [vmem:[#allocation8 + $0x1c] sm:$0xf]
    %v330 = vld [vmem:[#allocation8 + $0x20] sm:$0xf]
    %v331 = vld [vmem:[#allocation8 + $0x24] sm:$0xf]
    %v332 = vld [vmem:[#allocation8 + $0x28] sm:$0xf]
    %v333 = vld [vmem:[#allocation8 + $0x2c] sm:$0xf]
    %v334 = vld [vmem:[#allocation8 + $0x30] sm:$0xf]
    %v335 = vld [vmem:[#allocation8 + $0x34] sm:$0xf]
    %v336 = vld [vmem:[#allocation8 + $0x38] sm:$0xf]
    %v337 = vld [vmem:[#allocation8 + $0x3c] sm:$0xf]
    %v339 = vlaneseq
    %v340 = vshrl.u32 %v339, 7
    %v341 = vsub.s32 0, %v340
    %v342 = vrot.slane %v87, %v341
    %v360 = vunpack.c.l.b16 %v322
    %v361 = vunpack.c.l.b16 %v323
    %v362 = vunpack.c.l.b16 %v324
    %v363 = vunpack.c.l.b16 %v325
    %v364 = vunpack.c.l.b16 %v326
    %v365 = vunpack.c.l.b16 %v327
    %v366 = vunpack.c.l.b16 %v328
    %v367 = vunpack.c.l.b16 %v329
    %v368 = vunpack.c.l.b16 %v330
    %v369 = vunpack.c.l.b16 %v331
    %v370 = vunpack.c.l.b16 %v332
    %v371 = vunpack.c.l.b16 %v333
    %v372 = vunpack.c.l.b16 %v334
    %v373 = vunpack.c.l.b16 %v335
    %v374 = vunpack.c.l.b16 %v336
    %v375 = vunpack.c.l.b16 %v337
    %v376 = vpack.c.b16 %v361, %v360
    %v377 = vpack.c.b16 %v363, %v362
    %v378 = vpack.c.b16 %v365, %v364
    %v379 = vpack.c.b16 %v367, %v366
    %v380 = vpack.c.b16 %v369, %v368
    %v381 = vpack.c.b16 %v371, %v370
    %v382 = vpack.c.b16 %v373, %v372
    %v383 = vpack.c.b16 %v375, %v374
    %392 = vmatprep.subr.bf16.mxu0 0
    %393 = vmatpush1.bf16.msra.mxu0 %v376
    %394 = vmatprep.subr.bf16.mxu0 0
    %395 = vmatpush1.bf16.msra.mxu0 %v377
    %396 = vmatprep.subr.bf16.mxu0 0
    %397 = vmatpush1.bf16.msra.mxu0 %v378
    %398 = vmatprep.subr.bf16.mxu0 0
    %399 = vmatpush1.bf16.msra.mxu0 %v379
    %400 = vmatprep.subr.bf16.mxu0 0
    %401 = vmatpush1.bf16.msra.mxu0 %v380
    %402 = vmatprep.subr.bf16.mxu0 0
    %403 = vmatpush1.bf16.msra.mxu0 %v381
    %404 = vmatprep.subr.bf16.mxu0 0
    %405 = vmatpush1.bf16.msra.mxu0 %v382
    %406 = vmatprep.subr.bf16.mxu0 0
    %407 = vmatpush1.bf16.msra.mxu0 %v383
    %408 = vmatprep.subr.bf16.mxu0 0
    %409 = vmatpush1.bf16.msra.mxu0 0
    %410 = vmatprep.subr.bf16.mxu0 0
    %411 = vmatpush1.bf16.msra.mxu0 0
    %412 = vmatprep.subr.bf16.mxu0 0
    %413 = vmatpush1.bf16.msra.mxu0 0
    %414 = vmatprep.subr.bf16.mxu0 0
    %415 = vmatpush1.bf16.msra.mxu0 0
    %416 = vmatprep.subr.bf16.mxu0 0
    %417 = vmatpush1.bf16.msra.mxu0 0
    %418 = vmatprep.subr.bf16.mxu0 0
    %419 = vmatpush1.bf16.msra.mxu0 0
    %420 = vmatprep.subr.bf16.mxu0 0
    %421 = vmatpush1.bf16.msra.mxu0 0
    %422 = vmatprep.subr.bf16.mxu0 0
    %423 = vmatpush1.bf16.msra.mxu0 0
    %424 = vmatprep.mubr.bf16.mxu0 0
    %425 = vmatmul.mubr.bf16.gmra.mrb[0].mxu0 %v321
    %v426 = vpop.f32.mrb[0].mxu0
    %v427 = vadd.f32 %v342, %v426
    %v428 = vpop.f32.mrb[0].mxu0
    %v429 = vpop.f32.mrb[0].mxu0
    %v430 = vadd.f32 %v342, %v429
    %v431 = vpop.f32.mrb[0].mxu0
    %432 = vdwg.mxu0
    %433 = vst [vmem:[#allocation10] sm:$0xff] %v427
    %434 = vst [vmem:[#allocation10 + $0x8] sm:$0xff] %v430
    // Predicated region
    $region46: #{tpu_custom_call.1} parent=1 // pred_check
      _
    $region47: #{tpu_custom_call.1} parent=1 // pred_check_branch
      %436 = sbr.rel (0) target = $region49
    $region48: #{tpu_custom_call.1} parent=1 // pred_region
      %s438 = ssub.s32 256, 256
      %439 = vsyncadd [#allocation4], %s438
      %s440 = sshll.u32 [#allocation10], 4
      %s441 = int_to_ptr.vmem [resolvable:$true] %s440
      %446 = dma.vmem_to_hbm [thread:$0]  %s441, 256, %s7, [#allocation4], 128, 128, 8
    $region49: #{tpu_custom_call.1} parent=1 // pred_fallthru
      _
    // Predicated region
    $region50: #{tpu_custom_call.1} parent=1 // pred_check
      _
    $region51: #{tpu_custom_call.1} parent=1 // pred_check_branch
      %448 = sbr.rel (0) target = $region53
    $region52: #{tpu_custom_call.1} parent=1 // pred_region
      %449 = dma.done [#allocation4], 256
    $region53: #{tpu_custom_call.1} parent=1 // pred_fallthru
      _
    %450 = vsyncpa [#allocation3], 1
    %451 = vsyncpa [#allocation6], 1
    %452 = vsyncpa [#allocation9], 1
    %453 = vsyncpa [#allocation4], 1

// kernel: tpu_custom_call.1
$region0: #{tpu_custom_call.1}
  #allocation0 [shape = 'u32[]', space=smem, size = 0x4, offset = 0x4, fixed_abs, tag = 'smem constant byte address 0x4 - core index']
  #allocation1 [shape = 'u32[144,128]{1,0:T(1,128)}', space=vmem, size = 0x12000, scoped, tag = 'internal scratch']
  %s0 = inlined_call_operand.hbm [shape: bf16[16,128], index: 0, kind: input, shape index: {}]
  %s1 = inlined_call_operand.hbm [shape: bf16[128,128], index: 1, kind: input, shape index: {}]
  %s2 = inlined_call_operand.vmem [shape: f32[1,128], index: 2, kind: input, shape index: {}]
  %s3 = inlined_call_operand.hbm [shape: bf16[128,128], index: 3, kind: input, shape index: {}]
  %s4 = inlined_call_operand.vmem [shape: f32[1,128], index: 4, kind: input, shape index: {}]
  %s5 = inlined_call_operand.hbm [shape: bf16[128,128], index: 5, kind: input, shape index: {}]
  %s6 = inlined_call_operand.vmem [shape: f32[1,128], index: 6, kind: input, shape index: {}]
  %s7 = inlined_call_operand.hbm [shape: f32[16,128], index: 7, kind: output, shape index: {}]
  %s8 = sld [smem:[#allocation0]]
  $region54: #{tpu_custom_call.1} parent=0
    _
  %s10 = ssub.s32 1, %s8
  %s11 = scalar_select 0, %s10, %s8
  $region1: #{tpu_custom_call.1} parent=0
    #allocation2 [shape = 'u8[4096]{0}', space=vmem, size = 0x1000, scoped, tag = 'input window, operand 0, single buffered']
    #allocation3 [shape = 's32[1]{0}', space=sflag, size = 0x4, scoped, tag = 'scoped memory for tpu_custom_call.1']
    #allocation4 [shape = 's32[1]{0}', space=sflag, size = 0x4, scoped, tag = 'scoped memory for tpu_custom_call.1']
    #allocation5 [shape = 'u8[32768]{0}', space=vmem, size = 0x8000, scoped, tag = 'input window, operand 1, single buffered']
    #allocation6 [shape = 's32[1]{0}', space=sflag, size = 0x4, scoped, tag = 'scoped memory for tpu_custom_call.1']
    #allocation7 [shape = 'u8[32768]{0}', space=vmem, size = 0x8000, scoped, tag = 'input window, operand 3, single buffered']
    #allocation8 [shape = 'u8[32768]{0}', space=vmem, size = 0x8000, scoped, tag = 'input window, operand 5, single buffered']
    #allocation9 [shape = 's32[1]{0}', space=sflag, size = 0x4, scoped, tag = 'scoped memory for tpu_custom_call.1']
    #allocation10 [shape = 'u8[8192]{0}', space=vmem, size = 0x2000, scoped, tag = 'output window, operand 0, single buffered']
    %12 = vsyncpa [#allocation3], 0
    %13 = vsyncpa [#allocation6], 0
    %14 = vsyncpa [#allocation9], 0
    %15 = vsyncpa [#allocation4], 0
    // Predicated region
    $region2: #{tpu_custom_call.1} parent=1 // pred_check
      _
    $region3: #{tpu_custom_call.1} parent=1 // pred_check_branch
      %17 = sbr.rel (0) target = $region5
    $region4: #{tpu_custom_call.1} parent=1 // pred_region
      %s19 = ssub.s32 128, 128
      %20 = vsyncadd [#allocation3], %s19
      %s21 = sshll.u32 [#allocation2], 4
      %s22 = int_to_ptr.vmem [resolvable:$true] %s21
      %27 = dma.hbm_to_vmem [thread:$0]  %s0, 128, %s22, [#allocation3], 64, 64, 4
    $region5: #{tpu_custom_call.1} parent=1 // pred_fallthru
      _
    // Predicated region
    $region6: #{tpu_custom_call.1} parent=1 // pred_check
      _
    $region7: #{tpu_custom_call.1} parent=1 // pred_check_branch
      %29 = sbr.rel (0) target = $region9
    $region8: #{tpu_custom_call.1} parent=1 // pred_region
      %s31 = ssub.s32 1024, 1024
      %32 = vsyncadd [#allocation6], %s31
      %s33 = sshll.u32 [#allocation5], 4
      %s34 = int_to_ptr.vmem [resolvable:$true] %s33
      %39 = dma.hbm_to_vmem [thread:$0]  %s1, 1024, %s34, [#allocation6], 64, 64, 4
    $region9: #{tpu_custom_call.1} parent=1 // pred_fallthru
      _
    // Predicated region
    $region10: #{tpu_custom_call.1} parent=1 // pred_check
      _
    $region11: #{tpu_custom_call.1} parent=1 // pred_check_branch
      %41 = sbr.rel (0) target = $region13
    $region12: #{tpu_custom_call.1} parent=1 // pred_region
      _
    $region13: #{tpu_custom_call.1} parent=1 // pred_fallthru
      _
    // Predicated region
    $region14: #{tpu_custom_call.1} parent=1 // pred_check
      _
    $region15: #{tpu_custom_call.1} parent=1 // pred_check_branch
      %43 = sbr.rel (0) target = $region17
    $region16: #{tpu_custom_call.1} parent=1 // pred_region
      %s45 = ssub.s32 1024, 1024
      %46 = vsyncadd [#allocation6], %s45
      %s47 = sshll.u32 [#allocation7], 4
      %s48 = int_to_ptr.vmem [resolvable:$true] %s47
      %53 = dma.hbm_to_vmem [thread:$0]  %s3, 1024, %s48, [#allocation6], 64, 64, 4
    $region17: #{tpu_custom_call.1} parent=1 // pred_fallthru
      _
    // Predicated region
    $region18: #{tpu_custom_call.1} parent=1 // pred_check
      _
    $region19: #{tpu_custom_call.1} parent=1 // pred_check_branch
      %55 = sbr.rel (0) target = $region21
    $region20: #{tpu_custom_call.1} parent=1 // pred_region
      _
    $region21: #{tpu_custom_call.1} parent=1 // pred_fallthru
      _
    // Predicated region
    $region22: #{tpu_custom_call.1} parent=1 // pred_check
      _
    $region23: #{tpu_custom_call.1} parent=1 // pred_check_branch
      %57 = sbr.rel (0) target = $region25
    $region24: #{tpu_custom_call.1} parent=1 // pred_region
      %s59 = ssub.s32 1024, 1024
      %60 = vsyncadd [#allocation9], %s59
      %s61 = sshll.u32 [#allocation8], 4
      %s62 = int_to_ptr.vmem [resolvable:$true] %s61
      %67 = dma.hbm_to_vmem [thread:$0]  %s5, 1024, %s62, [#allocation9], 64, 64, 4
    $region25: #{tpu_custom_call.1} parent=1 // pred_fallthru
      _
    // Predicated region
    $region26: #{tpu_custom_call.1} parent=1 // pred_check
      _
    $region27: #{tpu_custom_call.1} parent=1 // pred_check_branch
      %69 = sbr.rel (0) target = $region29
    $region28: #{tpu_custom_call.1} parent=1 // pred_region
      _
    $region29: #{tpu_custom_call.1} parent=1 // pred_fallthru
      _
    // Predicated region
    $region30: #{tpu_custom_call.1} parent=1 // pred_check
      _
    $region31: #{tpu_custom_call.1} parent=1 // pred_check_branch
      %71 = sbr.rel (0) target = $region33
    $region32: #{tpu_custom_call.1} parent=1 // pred_region
      %72 = dma.done [#allocation3], 128
    $region33: #{tpu_custom_call.1} parent=1 // pred_fallthru
      _
    // Predicated region
    $region34: #{tpu_custom_call.1} parent=1 // pred_check
      _
    $region35: #{tpu_custom_call.1} parent=1 // pred_check_branch
      %74 = sbr.rel (0) target = $region37
    $region36: #{tpu_custom_call.1} parent=1 // pred_region
      %75 = dma.done [#allocation6], 1024
    $region37: #{tpu_custom_call.1} parent=1 // pred_fallthru
      _
    // Predicated region
    $region38: #{tpu_custom_call.1} parent=1 // pred_check
      _
    $region39: #{tpu_custom_call.1} parent=1 // pred_check_branch
      %77 = sbr.rel (0) target = $region41
    $region40: #{tpu_custom_call.1} parent=1 // pred_region
      %78 = dma.done [#allocation6], 1024
    $region41: #{tpu_custom_call.1} parent=1 // pred_fallthru
      _
    // Predicated region
    $region42: #{tpu_custom_call.1} parent=1 // pred_check
      _
    $region43: #{tpu_custom_call.1} parent=1 // pred_check_branch
      %80 = sbr.rel (0) target = $region45
    $region44: #{tpu_custom_call.1} parent=1 // pred_region
      %81 = dma.done [#allocation9], 1024
    $region45: #{tpu_custom_call.1} parent=1 // pred_fallthru
      _
    %v83 = vld [vmem:[#allocation2] sm:$0xf]
    %v84 = vld [vmem:[#allocation2 + $0x4] sm:$0xf]
    %v85 = vld [vmem:[%s2] sm:$0x1]
    %v86 = vld [vmem:[%s4] sm:$0x1]
    %v87 = vld [vmem:[%s6] sm:$0x1]
    %v88 = vld [vmem:[#allocation5] sm:$0xf]
    %v89 = vld [vmem:[#allocation5 + $0x4] sm:$0xf]
    %v90 = vld [vmem:[#allocation5 + $0x8] sm:$0xf]
    %v91 = vld [vmem:[#allocation5 + $0xc] sm:$0xf]
    %v92 = vld [vmem:[#allocation5 + $0x10] sm:$0xf]
    %v93 = vld [vmem:[#allocation5 + $0x14] sm:$0xf]
    %v94 = vld [vmem:[#allocation5 + $0x18] sm:$0xf]
    %v95 = vld [vmem:[#allocation5 + $0x1c] sm:$0xf]
    %v96 = vld [vmem:[#allocation5 + $0x20] sm:$0xf]
    %v97 = vld [vmem:[#allocation5 + $0x24] sm:$0xf]
    %v98 = vld [vmem:[#allocation5 + $0x28] sm:$0xf]
    %v99 = vld [vmem:[#allocation5 + $0x2c] sm:$0xf]
    %v100 = vld [vmem:[#allocation5 + $0x30] sm:$0xf]
    %v101 = vld [vmem:[#allocation5 + $0x34] sm:$0xf]
    %v102 = vld [vmem:[#allocation5 + $0x38] sm:$0xf]
    %v103 = vld [vmem:[#allocation5 + $0x3c] sm:$0xf]
    %v105 = vlaneseq
    %v106 = vshrl.u32 %v105, 7
    %v107 = vsub.s32 0, %v106
    %v108 = vrot.slane %v85, %v107
    %v112 = vunpack.c.l.b16 %v83
    %v113 = vunpack.c.l.b16 %v84
    %v114 = vpack.c.b16 %v113, %v112
    %v132 = vunpack.c.l.b16 %v88
    %v133 = vunpack.c.l.b16 %v89
    %v134 = vunpack.c.l.b16 %v90
    %v135 = vunpack.c.l.b16 %v91
    %v136 = vunpack.c.l.b16 %v92
    %v137 = vunpack.c.l.b16 %v93
    %v138 = vunpack.c.l.b16 %v94
    %v139 = vunpack.c.l.b16 %v95
    %v140 = vunpack.c.l.b16 %v96
    %v141 = vunpack.c.l.b16 %v97
    %v142 = vunpack.c.l.b16 %v98
    %v143 = vunpack.c.l.b16 %v99
    %v144 = vunpack.c.l.b16 %v100
    %v145 = vunpack.c.l.b16 %v101
    %v146 = vunpack.c.l.b16 %v102
    %v147 = vunpack.c.l.b16 %v103
    %v148 = vpack.c.b16 %v133, %v132
    %v149 = vpack.c.b16 %v135, %v134
    %v150 = vpack.c.b16 %v137, %v136
    %v151 = vpack.c.b16 %v139, %v138
    %v152 = vpack.c.b16 %v141, %v140
    %v153 = vpack.c.b16 %v143, %v142
    %v154 = vpack.c.b16 %v145, %v144
    %v155 = vpack.c.b16 %v147, %v146
    %164 = vmatprep.subr.bf16.mxu0 0
    %165 = vmatpush1.bf16.msra.mxu0 %v148
    %166 = vmatprep.subr.bf16.mxu0 0
    %167 = vmatpush1.bf16.msra.mxu0 %v149
    %168 = vmatprep.subr.bf16.mxu0 0
    %169 = vmatpush1.bf16.msra.mxu0 %v150
    %170 = vmatprep.subr.bf16.mxu0 0
    %171 = vmatpush1.bf16.msra.mxu0 %v151
    %172 = vmatprep.subr.bf16.mxu0 0
    %173 = vmatpush1.bf16.msra.mxu0 %v152
    %174 = vmatprep.subr.bf16.mxu0 0
    %175 = vmatpush1.bf16.msra.mxu0 %v153
    %176 = vmatprep.subr.bf16.mxu0 0
    %177 = vmatpush1.bf16.msra.mxu0 %v154
    %178 = vmatprep.subr.bf16.mxu0 0
    %179 = vmatpush1.bf16.msra.mxu0 %v155
    %180 = vmatprep.subr.bf16.mxu0 0
    %181 = vmatpush1.bf16.msra.mxu0 0
    %182 = vmatprep.subr.bf16.mxu0 0
    %183 = vmatpush1.bf16.msra.mxu0 0
    %184 = vmatprep.subr.bf16.mxu0 0
    %185 = vmatpush1.bf16.msra.mxu0 0
    %186 = vmatprep.subr.bf16.mxu0 0
    %187 = vmatpush1.bf16.msra.mxu0 0
    %188 = vmatprep.subr.bf16.mxu0 0
    %189 = vmatpush1.bf16.msra.mxu0 0
    %190 = vmatprep.subr.bf16.mxu0 0
    %191 = vmatpush1.bf16.msra.mxu0 0
    %192 = vmatprep.subr.bf16.mxu0 0
    %193 = vmatpush1.bf16.msra.mxu0 0
    %194 = vmatprep.subr.bf16.mxu0 0
    %195 = vmatpush1.bf16.msra.mxu0 0
    %196 = vmatprep.mubr.bf16.mxu0 0
    %197 = vmatmul.mubr.bf16.gmra.mrb[0].mxu0 %v114
    %v198 = vpop.f32.mrb[0].mxu0
    %v199 = vadd.f32 %v108, %v198
    %v200 = vpop.f32.mrb[0].mxu0
    %v201 = vpop.f32.mrb[0].mxu0
    %v202 = vadd.f32 %v108, %v201
    %v203 = vpop.f32.mrb[0].mxu0
    %204 = vdwg.mxu0
    %v205 = vmax.f32 %v199, 0.0
    %v206 = vmax.f32 %v202, 0.0
    %v207 = vpack.c.bf16 %v206, %v205
    %v208 = vld [vmem:[#allocation7] sm:$0xf]
    %v209 = vld [vmem:[#allocation7 + $0x4] sm:$0xf]
    %v210 = vld [vmem:[#allocation7 + $0x8] sm:$0xf]
    %v211 = vld [vmem:[#allocation7 + $0xc] sm:$0xf]
    %v212 = vld [vmem:[#allocation7 + $0x10] sm:$0xf]
    %v213 = vld [vmem:[#allocation7 + $0x14] sm:$0xf]
    %v214 = vld [vmem:[#allocation7 + $0x18] sm:$0xf]
    %v215 = vld [vmem:[#allocation7 + $0x1c] sm:$0xf]
    %v216 = vld [vmem:[#allocation7 + $0x20] sm:$0xf]
    %v217 = vld [vmem:[#allocation7 + $0x24] sm:$0xf]
    %v218 = vld [vmem:[#allocation7 + $0x28] sm:$0xf]
    %v219 = vld [vmem:[#allocation7 + $0x2c] sm:$0xf]
    %v220 = vld [vmem:[#allocation7 + $0x30] sm:$0xf]
    %v221 = vld [vmem:[#allocation7 + $0x34] sm:$0xf]
    %v222 = vld [vmem:[#allocation7 + $0x38] sm:$0xf]
    %v223 = vld [vmem:[#allocation7 + $0x3c] sm:$0xf]
    %v225 = vlaneseq
    %v226 = vshrl.u32 %v225, 7
    %v227 = vsub.s32 0, %v226
    %v228 = vrot.slane %v86, %v227
    %v246 = vunpack.c.l.b16 %v208
    %v247 = vunpack.c.l.b16 %v209
    %v248 = vunpack.c.l.b16 %v210
    %v249 = vunpack.c.l.b16 %v211
    %v250 = vunpack.c.l.b16 %v212
    %v251 = vunpack.c.l.b16 %v213
    %v252 = vunpack.c.l.b16 %v214
    %v253 = vunpack.c.l.b16 %v215
    %v254 = vunpack.c.l.b16 %v216
    %v255 = vunpack.c.l.b16 %v217
    %v256 = vunpack.c.l.b16 %v218
    %v257 = vunpack.c.l.b16 %v219
    %v258 = vunpack.c.l.b16 %v220
    %v259 = vunpack.c.l.b16 %v221
    %v260 = vunpack.c.l.b16 %v222
    %v261 = vunpack.c.l.b16 %v223
    %v262 = vpack.c.b16 %v247, %v246
    %v263 = vpack.c.b16 %v249, %v248
    %v264 = vpack.c.b16 %v251, %v250
    %v265 = vpack.c.b16 %v253, %v252
    %v266 = vpack.c.b16 %v255, %v254
    %v267 = vpack.c.b16 %v257, %v256
    %v268 = vpack.c.b16 %v259, %v258
    %v269 = vpack.c.b16 %v261, %v260
    %278 = vmatprep.subr.bf16.mxu0 0
    %279 = vmatpush1.bf16.msra.mxu0 %v262
    %280 = vmatprep.subr.bf16.mxu0 0
    %281 = vmatpush1.bf16.msra.mxu0 %v263
    %282 = vmatprep.subr.bf16.mxu0 0
    %283 = vmatpush1.bf16.msra.mxu0 %v264
    %284 = vmatprep.subr.bf16.mxu0 0
    %285 = vmatpush1.bf16.msra.mxu0 %v265
    %286 = vmatprep.subr.bf16.mxu0 0
    %287 = vmatpush1.bf16.msra.mxu0 %v266
    %288 = vmatprep.subr.bf16.mxu0 0
    %289 = vmatpush1.bf16.msra.mxu0 %v267
    %290 = vmatprep.subr.bf16.mxu0 0
    %291 = vmatpush1.bf16.msra.mxu0 %v268
    %292 = vmatprep.subr.bf16.mxu0 0
    %293 = vmatpush1.bf16.msra.mxu0 %v269
    %294 = vmatprep.subr.bf16.mxu0 0
    %295 = vmatpush1.bf16.msra.mxu0 0
    %296 = vmatprep.subr.bf16.mxu0 0
    %297 = vmatpush1.bf16.msra.mxu0 0
    %298 = vmatprep.subr.bf16.mxu0 0
    %299 = vmatpush1.bf16.msra.mxu0 0
    %300 = vmatprep.subr.bf16.mxu0 0
    %301 = vmatpush1.bf16.msra.mxu0 0
    %302 = vmatprep.subr.bf16.mxu0 0
    %303 = vmatpush1.bf16.msra.mxu0 0
    %304 = vmatprep.subr.bf16.mxu0 0
    %305 = vmatpush1.bf16.msra.mxu0 0
    %306 = vmatprep.subr.bf16.mxu0 0
    %307 = vmatpush1.bf16.msra.mxu0 0
    %308 = vmatprep.subr.bf16.mxu0 0
    %309 = vmatpush1.bf16.msra.mxu0 0
    %310 = vmatprep.mubr.bf16.mxu0 0
    %311 = vmatmul.mubr.bf16.gmra.mrb[0].mxu0 %v207
    %v312 = vpop.f32.mrb[0].mxu0
    %v313 = vadd.f32 %v228, %v312
    %v314 = vpop.f32.mrb[0].mxu0
    %v315 = vpop.f32.mrb[0].mxu0
    %v316 = vadd.f32 %v228, %v315
    %v317 = vpop.f32.mrb[0].mxu0
    %318 = vdwg.mxu0
    %v319 = vmax.f32 %v313, 0.0
    %v320 = vmax.f32 %v316, 0.0
    %v321 = vpack.c.bf16 %v320, %v319
    %v322 = vld [vmem:[#allocation8] sm:$0xf]
    %v323 = vld [vmem:[#allocation8 + $0x4] sm:$0xf]
    %v324 = vld [vmem:[#allocation8 + $0x8] sm:$0xf]
    %v325 = vld [vmem:[#allocation8 + $0xc] sm:$0xf]
    %v326 = vld [vmem:[#allocation8 + $0x10] sm:$0xf]
    %v327 = vld [vmem:[#allocation8 + $0x14] sm:$0xf]
    %v328 = vld [vmem:[#allocation8 + $0x18] sm:$0xf]
    %v329 = vld [vmem:[#allocation8 + $0x1c] sm:$0xf]
    %v330 = vld [vmem:[#allocation8 + $0x20] sm:$0xf]
    %v331 = vld [vmem:[#allocation8 + $0x24] sm:$0xf]
    %v332 = vld [vmem:[#allocation8 + $0x28] sm:$0xf]
    %v333 = vld [vmem:[#allocation8 + $0x2c] sm:$0xf]
    %v334 = vld [vmem:[#allocation8 + $0x30] sm:$0xf]
    %v335 = vld [vmem:[#allocation8 + $0x34] sm:$0xf]
    %v336 = vld [vmem:[#allocation8 + $0x38] sm:$0xf]
    %v337 = vld [vmem:[#allocation8 + $0x3c] sm:$0xf]
    %v339 = vlaneseq
    %v340 = vshrl.u32 %v339, 7
    %v341 = vsub.s32 0, %v340
    %v342 = vrot.slane %v87, %v341
    %v360 = vunpack.c.l.b16 %v322
    %v361 = vunpack.c.l.b16 %v323
    %v362 = vunpack.c.l.b16 %v324
    %v363 = vunpack.c.l.b16 %v325
    %v364 = vunpack.c.l.b16 %v326
    %v365 = vunpack.c.l.b16 %v327
    %v366 = vunpack.c.l.b16 %v328
    %v367 = vunpack.c.l.b16 %v329
    %v368 = vunpack.c.l.b16 %v330
    %v369 = vunpack.c.l.b16 %v331
    %v370 = vunpack.c.l.b16 %v332
    %v371 = vunpack.c.l.b16 %v333
    %v372 = vunpack.c.l.b16 %v334
    %v373 = vunpack.c.l.b16 %v335
    %v374 = vunpack.c.l.b16 %v336
    %v375 = vunpack.c.l.b16 %v337
    %v376 = vpack.c.b16 %v361, %v360
    %v377 = vpack.c.b16 %v363, %v362
    %v378 = vpack.c.b16 %v365, %v364
    %v379 = vpack.c.b16 %v367, %v366
    %v380 = vpack.c.b16 %v369, %v368
    %v381 = vpack.c.b16 %v371, %v370
    %v382 = vpack.c.b16 %v373, %v372
    %v383 = vpack.c.b16 %v375, %v374
    %392 = vmatprep.subr.bf16.mxu0 0
    %393 = vmatpush1.bf16.msra.mxu0 %v376
    %394 = vmatprep.subr.bf16.mxu0 0
    %395 = vmatpush1.bf16.msra.mxu0 %v377
    %396 = vmatprep.subr.bf16.mxu0 0
    %397 = vmatpush1.bf16.msra.mxu0 %v378
    %398 = vmatprep.subr.bf16.mxu0 0
    %399 = vmatpush1.bf16.msra.mxu0 %v379
    %400 = vmatprep.subr.bf16.mxu0 0
    %401 = vmatpush1.bf16.msra.mxu0 %v380
    %402 = vmatprep.subr.bf16.mxu0 0
    %403 = vmatpush1.bf16.msra.mxu0 %v381
    %404 = vmatprep.subr.bf16.mxu0 0
    %405 = vmatpush1.bf16.msra.mxu0 %v382
    %406 = vmatprep.subr.bf16.mxu0 0
    %407 = vmatpush1.bf16.msra.mxu0 %v383
    %408 = vmatprep.subr.bf16.mxu0 0
    %409 = vmatpush1.bf16.msra.mxu0 0
    %410 = vmatprep.subr.bf16.mxu0 0
    %411 = vmatpush1.bf16.msra.mxu0 0
    %412 = vmatprep.subr.bf16.mxu0 0
    %413 = vmatpush1.bf16.msra.mxu0 0
    %414 = vmatprep.subr.bf16.mxu0 0
    %415 = vmatpush1.bf16.msra.mxu0 0
    %416 = vmatprep.subr.bf16.mxu0 0
    %417 = vmatpush1.bf16.msra.mxu0 0
    %418 = vmatprep.subr.bf16.mxu0 0
    %419 = vmatpush1.bf16.msra.mxu0 0
    %420 = vmatprep.subr.bf16.mxu0 0
    %421 = vmatpush1.bf16.msra.mxu0 0
    %422 = vmatprep.subr.bf16.mxu0 0
    %423 = vmatpush1.bf16.msra.mxu0 0
    %424 = vmatprep.mubr.bf16.mxu0 0
    %425 = vmatmul.mubr.bf16.gmra.mrb[0].mxu0 %v321
    %v426 = vpop.f32.mrb[0].mxu0
    %v427 = vadd.f32 %v342, %v426
    %v428 = vpop.f32.mrb[0].mxu0
    %v429 = vpop.f32.mrb[0].mxu0
    %v430 = vadd.f32 %v342, %v429
    %v431 = vpop.f32.mrb[0].mxu0
    %432 = vdwg.mxu0
    %433 = vst [vmem:[#allocation10] sm:$0xff] %v427
    %434 = vst [vmem:[#allocation10 + $0x8] sm:$0xff] %v430
    // Predicated region
    $region46: #{tpu_custom_call.1} parent=1 // pred_check
      _
    $region47: #{tpu_custom_call.1} parent=1 // pred_check_branch
      %436 = sbr.rel (0) target = $region49
    $region48: #{tpu_custom_call.1} parent=1 // pred_region
      %s438 = ssub.s32 256, 256
      %439 = vsyncadd [#allocation4], %s438
      %s440 = sshll.u32 [#allocation10], 4
      %s441 = int_to_ptr.vmem [resolvable:$true] %s440
      %446 = dma.vmem_to_hbm [thread:$0]  %s441, 256, %s7, [#allocation4], 128, 128, 8
    $region49: #{tpu_custom_call.1} parent=1 // pred_fallthru
      _
    // Predicated region
    $region50: #{tpu_custom_call.1} parent=1 // pred_check
      _
    $region51: #{tpu_custom_call.1} parent=1 // pred_check_branch
      %448 = sbr.rel (0) target = $region53
    $region52: #{tpu_custom_call.1} parent=1 // pred_region
      %449 = dma.done [#allocation4], 256
    $region53: #{tpu_custom_call.1} parent=1 // pred_fallthru
      _
    %450 = vsyncpa [#allocation3], 1
    %451 = vsyncpa [#allocation6], 1
    %452 = vsyncpa [#allocation9], 1
    %453 = vsyncpa [#allocation4], 1

</llo_original>
